<compile_context>
chip_gen: v7x
topology: tpu7x:2x2x1
jax: 0.10.0
libtpu: 0.0.40
codegen_flags: <defaults>
</compile_context>

<pallas_src>
import functools
from typing import NamedTuple

import jax
import jax.numpy as jnp
from jax.experimental import pallas as pl
from jax.experimental.pallas import tpu as pltpu

# ---- small "cfg" (mirrors cfg.MODEL.ROI_BOX_HEAD at reduced scale) ----------
POOLER_RESOLUTION = 4          # resolution (7 in the real config)
POOLER_SCALES = (0.25,)        # single-level pooler config
SAMPLING_RATIO = 2             # sampling_ratio (> 0 assumed)
MLP_HEAD_DIM = 32              # representation_size (1024 in the real config)
IN_CHANNELS = 4                # in_channels (256 in the real config)

COMPUTE_DTYPE = jnp.bfloat16   # MXU operand dtype (f32 accumulation in-kernel)


def _round_up(x, m):
    return ((x + m - 1) // m) * m


def _cdiv(a, b):
    return -(-a // b)


def _vmem_capacity_bytes():
    try:
        return int(pltpu.get_tpu_info().vmem_capacity_bytes)
    except Exception:
        return 64 * 1024 * 1024        # conservative (v7x-sized) fallback


# -----------------------------------------------------------------------------
# Pooler (ROIAlign, legacy aligned=False) — plain JAX glue, channel-last output.
# The (gh*gw) averaging and the out-of-range sample mask are folded into the
# bilinear weights; the 4 corner gathers (bf16 flat view) accumulate in place.
# TODO(synk): move the data-dependent bilinear gather into Pallas with
#             PrefetchScalarGridSpec (per-ROI corner indices scalar-prefetched).
# -----------------------------------------------------------------------------
def roi_align_nhwc(feat, rois, output_size, spatial_scale, sampling_ratio,
                   out_dtype=COMPUTE_DTYPE):
    N, C, H, W = feat.shape
    R = rois.shape[0]
    ph, pw = output_size
    gh = gw = sampling_ratio

    roi_batch = rois[:, 0].astype(jnp.int32)
    x1 = rois[:, 1] * spatial_scale
    y1 = rois[:, 2] * spatial_scale
    x2 = rois[:, 3] * spatial_scale
    y2 = rois[:, 4] * spatial_scale
    roi_w = jnp.maximum(x2 - x1, 1.0)          # legacy (aligned=False) behavior
    roi_h = jnp.maximum(y2 - y1, 1.0)
    bin_h = roi_h / ph
    bin_w = roi_w / pw

    sy = (jnp.arange(gh, dtype=jnp.float32) + 0.5) / gh
    sx = (jnp.arange(gw, dtype=jnp.float32) + 0.5) / gw
    py = jnp.arange(ph, dtype=jnp.float32)
    px = jnp.arange(pw, dtype=jnp.float32)
    ys = y1[:, None, None] + (py[None, :, None] + sy[None, None, :]) * bin_h[:, None, None]
    xs = x1[:, None, None] + (px[None, :, None] + sx[None, None, :]) * bin_w[:, None, None]

    yy = jnp.broadcast_to(ys[:, :, :, None, None], (R, ph, gh, pw, gw))
    xx = jnp.broadcast_to(xs[:, None, None, :, :], (R, ph, gh, pw, gw))
    valid = (yy >= -1.0) & (yy <= H) & (xx >= -1.0) & (xx <= W)
    y = jnp.clip(yy, 0.0, H - 1.0)
    x = jnp.clip(xx, 0.0, W - 1.0)
    y0 = jnp.floor(y).astype(jnp.int32)
    x0 = jnp.floor(x).astype(jnp.int32)
    y1i = jnp.minimum(y0 + 1, H - 1)
    x1i = jnp.minimum(x0 + 1, W - 1)
    ly = y - y0.astype(jnp.float32)
    lx = x - x0.astype(jnp.float32)
    hy = 1.0 - ly
    hx = 1.0 - lx

    # Fold mean over (gh, gw) and the validity mask into the corner weights.
    scale = valid.astype(jnp.float32) * (1.0 / (gh * gw))

    feat_flat = feat.transpose(0, 2, 3, 1).reshape(N * H * W, C).astype(out_dtype)
    base = roi_batch[:, None, None, None, None] * (H * W)

    def weighted_corner(w, yi, xi):
        idx = base + yi * W + xi                       # (R, ph, gh, pw, gw)
        g = jnp.take(feat_flat, idx, axis=0)           # (R, ph, gh, pw, gw, C)
        return w[..., None] * g                        # promotes to f32

    acc = weighted_corner(hy * hx * scale, y0, x0)
    acc = acc + weighted_corner(hy * lx * scale, y0, x1i)
    acc = acc + weighted_corner(ly * hx * scale, y1i, x0)
    acc = acc + weighted_corner(ly * lx * scale, y1i, x1i)
    pooled = acc.sum(axis=(2, 4))                      # (R, ph, pw, C) f32
    return pooled.astype(out_dtype)                    # bf16 straight to the MLP


# -----------------------------------------------------------------------------
# One-time MLP parameter preparation (hoisted out of the per-call path).
# -----------------------------------------------------------------------------
class MlpConfig(NamedTuple):
    D: int
    D_p: int
    tile_k: int
    num_k: int
    H1: int
    H1_p: int
    H2: int
    H2_p: int
    tile_rows: int


class MlpParams(NamedTuple):
    w6p: jax.Array     # (D_p, H1_p) bf16, rows permuted to (ph, pw, C) order
    b6p: jax.Array     # (1, H1_p)  f32
    w7p: jax.Array     # (H1_p, H2_p) bf16
    b7p: jax.Array     # (1, H2_p)  f32


def prepare_mlp_params(w6, b6, w7, b7, *, pooled_layout, tile_rows=256,
                       compute_dtype=COMPUTE_DTYPE):
    C, ph, pw = pooled_layout
    D, H1 = w6.shape
    H2 = w7.shape[1]
    assert D == C * ph * pw

    # PyTorch flattens pooled (R, C, ph, pw); our pooler emits (R, ph, pw, C).
    # Permute w6's input rows once so  x_nhwc_flat @ w6_perm == x_nchw_flat @ w6.
    w6 = w6.reshape(C, ph, pw, H1).transpose(1, 2, 0, 3).reshape(D, H1)

    isz = jnp.dtype(compute_dtype).itemsize
    D_p0 = _round_up(D, 128)
    H1_p = _round_up(H1, 128)
    H2_p = _round_up(H2, 128)

    vmem_cap = _vmem_capacity_bytes()
    w6_bytes = D_p0 * H1_p * isz
    if w6_bytes <= vmem_cap // 4:
        tile_k, num_k = D_p0, 1            # w6 fully VMEM-resident (v5e/v6e)
    else:
        target = 8 * 1024 * 1024           # ~8 MiB streamed K chunks (v7x)
        max_tile_k = max(128, (target // (H1_p * isz)) // 128 * 128)
        num_k = _cdiv(D_p0, max_tile_k)
        tile_k = _round_up(_cdiv(D_p0, num_k), 128)
    D_p = tile_k * num_k

    # Zero padding is inert: padded rows/cols contribute nothing and padded
    # outputs are sliced off.
    w6p = jnp.zeros((D_p, H1_p), compute_dtype).at[:D, :H1].set(w6.astype(compute_dtype))
    w7p = jnp.zeros((H1_p, H2_p), compute_dtype).at[:H1, :H2].set(w7.astype(compute_dtype))
    b6p = jnp.zeros((1, H1_p), jnp.float32).at[:, :H1].set(b6.reshape(1, -1))
    b7p = jnp.zeros((1, H2_p), jnp.float32).at[:, :H2].set(b7.reshape(1, -1))

    cfg = MlpConfig(D=D, D_p=D_p, tile_k=tile_k, num_k=num_k,
                    H1=H1, H1_p=H1_p, H2=H2, H2_p=H2_p, tile_rows=tile_rows)
    return cfg, MlpParams(w6p, b6p, w7p, b7p)


# -----------------------------------------------------------------------------
# Pallas kernel: fused  relu(x @ W6 + b6) @ W7 + b7 -> relu  (the MLP hot path)
# Grid = (row tiles 'parallel', fc6-K tiles 'arbitrary').  f32 accumulator in
# VMEM scratch; @pl.when(k==0) init; @pl.when(k==last) bias+ReLU+fc7+store.
# -----------------------------------------------------------------------------
def _mlp_kernel(x_ref, w6_ref, b6_ref, w7_ref, b7_ref, o_ref, acc_ref):
    k = pl.program_id(1)

    @pl.when(k == 0)
    def _():
        acc_ref[...] = jnp.zeros_like(acc_ref)

    acc_ref[...] += jnp.dot(x_ref[...], w6_ref[...],
                            preferred_element_type=jnp.float32)

    @pl.when(k == pl.num_programs(1) - 1)
    def _():
        # Epilogue in f32 (v5e VPU has no bf16 ALU); cast only to feed the MXU.
        h = jnp.maximum(acc_ref[...] + b6_ref[...], 0.0)          # relu(fc6(x))
        h = jnp.dot(h.astype(w7_ref.dtype), w7_ref[...],
                    preferred_element_type=jnp.float32)
        o_ref[...] = jnp.maximum(h + b7_ref[...], 0.0)            # relu(fc7(x))


def mlp_pallas(x, cfg: MlpConfig, p: MlpParams):
    """x: (R, D) bf16 in channel-last flatten order. Returns (R, H2) f32."""
    R, D = x.shape
    assert D == cfg.D

    tile_rows = max(8, min(cfg.tile_rows, _round_up(R, 8)))
    R_p = _round_up(R, tile_rows)
    cd = p.w6p.dtype
    isz = jnp.dtype(cd).itemsize

    if (R_p, cfg.D_p) != (R, D):
        xp = jnp.zeros((R_p, cfg.D_p), cd).at[:R, :D].set(x.astype(cd))
    else:
        xp = x.astype(cd)

    n_row_tiles = R_p // tile_rows
    grid = (n_row_tiles, cfg.num_k)

    if cfg.num_k == 1:
        w6_map = lambda i, k: (0, 0)        # resident: DMA'd exactly once
    else:
        w6_map = lambda i, k: (k, 0)        # streamed per row tile

    # VMEM budget derived from the actual tiling (double-buffered blocks + the
    # f32 accumulator) with headroom for compiler-internal scratch.
    # NOTE: constant-index blocks (resident w6, w7, biases) are fetched once but
    # still carry pipeline buffers; pl.Buffered(1) could reclaim that VMEM.
    vmem_bytes = (
        2 * tile_rows * cfg.tile_k * isz          # x tiles
        + 2 * cfg.tile_k * cfg.H1_p * isz         # w6 block
        + 2 * cfg.H1_p * cfg.H2_p * isz           # w7
        + 2 * (cfg.H1_p + cfg.H2_p) * 4           # biases
        + 2 * tile_rows * cfg.H2_p * 4            # out tiles
        + tile_rows * cfg.H1_p * 4                # accumulator scratch
    )
    vmem_limit = min(max(32 * 1024 * 1024, int(vmem_bytes * 1.3) + (2 << 20)),
                     100 * 1024 * 1024)

    w6_traffic = p.w6p.size * isz * (1 if cfg.num_k == 1 else n_row_tiles)
    cost = pl.CostEstimate(
        flops=2 * R_p * cfg.D_p * cfg.H1_p + 2 * R_p * cfg.H1_p * cfg.H2_p,
        transcendentals=0,
        bytes_accessed=(xp.size * isz + w6_traffic + p.w7p.size * isz
                        + (p.b6p.size + p.b7p.size + R_p * cfg.H2_p) * 4))

    out = pl.pallas_call(
        _mlp_kernel,
        out_shape=jax.ShapeDtypeStruct((R_p, cfg.H2_p), jnp.float32),
        grid=grid,
        in_specs=[
            pl.BlockSpec((tile_rows, cfg.tile_k), lambda i, k: (i, k)),  # x tile
            pl.BlockSpec((cfg.tile_k, cfg.H1_p), w6_map),                # fc6 W
            pl.BlockSpec((1, cfg.H1_p), lambda i, k: (0, 0)),            # fc6 b
            pl.BlockSpec((cfg.H1_p, cfg.H2_p), lambda i, k: (0, 0)),     # fc7 W
            pl.BlockSpec((1, cfg.H2_p), lambda i, k: (0, 0)),            # fc7 b
        ],
        out_specs=pl.BlockSpec((tile_rows, cfg.H2_p), lambda i, k: (i, 0)),
        scratch_shapes=[pltpu.VMEM((tile_rows, cfg.H1_p), jnp.float32)],
        compiler_params=pltpu.CompilerParams(
            dimension_semantics=("parallel", "arbitrary"),
            vmem_limit_bytes=vmem_limit),
        cost_estimate=cost,
    )(xp, p.w6p, p.b6p, p.w7p, p.b7p)
    return out[:R, :cfg.H2]


# -----------------------------------------------------------------------------
# Full module forward
# -----------------------------------------------------------------------------
def fpn2mlp_feature_extractor(features, proposals, params: MlpParams, *, cfg: MlpConfig):
    """features: list of NCHW levels (single level here); proposals: (R, 5)."""
    pooled = roi_align_nhwc(features[0], proposals,
                            (POOLER_RESOLUTION, POOLER_RESOLUTION),
                            POOLER_SCALES[0], SAMPLING_RATIO)   # (R, ph, pw, C) bf16
    R = pooled.shape[0]
    x = pooled.reshape(R, -1)     # channel-last flatten; matches permuted w6 rows
    return mlp_pallas(x, cfg, params)                           # (R, fc7 out dim)


def make_fc_params(key, fan_in, fan_out):
    # make_fc (use_gn=False): kaiming_uniform_(weight, a=1), bias = 0
    bound = (3.0 / fan_in) ** 0.5
    w = jax.random.uniform(key, (fan_in, fan_out), jnp.float32, -bound, bound)
    b = jnp.zeros((1, fan_out), jnp.float32)
    return w, b


if __name__ == "__main__":
    key = jax.random.PRNGKey(0)
    k_feat, k_xy, k_wh, k_fc6, k_fc7 = jax.random.split(key, 5)

    # single FPN level: (batch=2, C=4, 16, 16); image size ~ 16 / 0.25 = 64
    feat = jax.random.normal(k_feat, (2, IN_CHANNELS, 16, 16), jnp.float32)

    # 8 proposals per image -> 16 rois total, [batch_idx, x1, y1, x2, y2]
    n_per_img, n_img = 8, 2
    R = n_per_img * n_img
    xy1 = jax.random.uniform(k_xy, (R, 2), jnp.float32, 0.0, 32.0)
    wh = jax.random.uniform(k_wh, (R, 2), jnp.float32, 8.0, 31.0)
    xy2 = jnp.clip(xy1 + wh, 0.0, 63.0)
    batch_idx = jnp.repeat(jnp.arange(n_img), n_per_img).astype(jnp.float32)[:, None]
    proposals = jnp.concatenate([batch_idx, xy1, xy2], axis=1)

    input_size = IN_CHANNELS * POOLER_RESOLUTION ** 2
    w6, b6 = make_fc_params(k_fc6, input_size, MLP_HEAD_DIM)
    w7, b7 = make_fc_params(k_fc7, MLP_HEAD_DIM, MLP_HEAD_DIM)

    # One-time prep: permute fc6 rows, pad, cast to bf16, pick K tiling.
    cfg, prepared = prepare_mlp_params(
        w6, b6, w7, b7,
        pooled_layout=(IN_CHANNELS, POOLER_RESOLUTION, POOLER_RESOLUTION))

    fwd = jax.jit(functools.partial(fpn2mlp_feature_extractor, cfg=cfg))
    out = fwd([feat], proposals, prepared)
    out = jax.block_until_ready(out)
    assert out.shape == (R, MLP_HEAD_DIM) and out.dtype == jnp.float32
    print("KERNEL_OK")
</pallas_src>

<mosaic_0001>
module attributes {stable_mosaic.version = 11 : i64} {
  func.func @_mlp_kernel(%arg0: i32, %arg1: i32, %arg2: memref<16x128xbf16, #tpu.memory_space<vmem>>, %arg3: memref<128x128xbf16, #tpu.memory_space<vmem>>, %arg4: memref<1x128xf32, #tpu.memory_space<vmem>>, %arg5: memref<128x128xbf16, #tpu.memory_space<vmem>>, %arg6: memref<1x128xf32, #tpu.memory_space<vmem>>, %arg7: memref<16x128xf32, #tpu.memory_space<vmem>>, %arg8: memref<16x128xf32, #tpu.memory_space<vmem>>) attributes {dimension_semantics = [#tpu.dimension_semantics<parallel>, #tpu.dimension_semantics<arbitrary>], iteration_bounds = array<i64: 1, 1>, scalar_prefetch = 0 : i64, scratch_operands = 1 : i64, tpu.core_type = #tpu.core_type<tc>, window_params = [{transform_indices = @transform_0, window_bounds = array<i64: 16, 128>}, {pipeline_mode = #tpu.pipeline_mode<synchronous>, transform_indices = @transform_1, window_bounds = array<i64: 128, 128>}, {pipeline_mode = #tpu.pipeline_mode<synchronous>, transform_indices = @transform_2, window_bounds = array<i64: 1, 128>}, {pipeline_mode = #tpu.pipeline_mode<synchronous>, transform_indices = @transform_3, window_bounds = array<i64: 128, 128>}, {pipeline_mode = #tpu.pipeline_mode<synchronous>, transform_indices = @transform_4, window_bounds = array<i64: 1, 128>}, {transform_indices = @transform_5, window_bounds = array<i64: 16, 128>}]} {
    %c0_i32 = arith.constant 0 : i32
    %0 = arith.cmpi eq, %arg1, %c0_i32 : i32
    %1 = arith.extui %0 : i1 to i32
    %c0_i32_0 = arith.constant 0 : i32
    %2 = arith.cmpi ne, %1, %c0_i32_0 : i32
    scf.if %2 {
      %cst_10 = arith.constant 0.000000e+00 : f32
      %12 = vector.broadcast %cst_10 : f32 to vector<16x128xf32>
      %c0_11 = arith.constant 0 : index
      %c0_12 = arith.constant 0 : index
      %13 = vector.load %arg8[%c0_11, %c0_12] : memref<16x128xf32, #tpu.memory_space<vmem>>, vector<16x128xf32>
      tpu.vector_store %arg8[%c0_11, %c0_12], %12 {strides = array<i32>} : memref<16x128xf32, #tpu.memory_space<vmem>>, vector<16x128xf32>,
    } else {
    }
    %c0 = arith.constant 0 : index
    %c0_1 = arith.constant 0 : index
    %3 = vector.load %arg8[%c0, %c0_1] : memref<16x128xf32, #tpu.memory_space<vmem>>, vector<16x128xf32>
    %c0_2 = arith.constant 0 : index
    %c0_3 = arith.constant 0 : index
    %4 = vector.load %arg2[%c0_2, %c0_3] : memref<16x128xbf16, #tpu.memory_space<vmem>>, vector<16x128xbf16>
    %c0_4 = arith.constant 0 : index
    %c0_5 = arith.constant 0 : index
    %5 = vector.load %arg3[%c0_4, %c0_5] : memref<128x128xbf16, #tpu.memory_space<vmem>>, vector<128x128xbf16>
    %cst = arith.constant dense<0.000000e+00> : vector<16x128xf32>
    %6 = tpu.matmul %4, %5, %cst {dimension_numbers = #tpu.dot_dimension_numbers<[1], [0], [0], [1], [0, 0, 1, 1], [], []>} : vector<16x128xbf16>, vector<128x128xbf16>, vector<16x128xf32> -> vector<16x128xf32>
    %7 = arith.addf %3, %6 : vector<16x128xf32>
    %c0_6 = arith.constant 0 : index
    %c0_7 = arith.constant 0 : index
    %8 = vector.load %arg8[%c0_6, %c0_7] : memref<16x128xf32, #tpu.memory_space<vmem>>, vector<16x128xf32>
    tpu.vector_store %arg8[%c0_6, %c0_7], %7 {strides = array<i32>} : memref<16x128xf32, #tpu.memory_space<vmem>>, vector<16x128xf32>,
    %c0_i32_8 = arith.constant 0 : i32
    %9 = arith.cmpi eq, %arg1, %c0_i32_8 : i32
    %10 = arith.extui %9 : i1 to i32
    %c0_i32_9 = arith.constant 0 : i32
    %11 = arith.cmpi ne, %10, %c0_i32_9 : i32
    scf.if %11 {
      %c0_10 = arith.constant 0 : index
      %c0_11 = arith.constant 0 : index
      %12 = vector.load %arg8[%c0_10, %c0_11] : memref<16x128xf32, #tpu.memory_space<vmem>>, vector<16x128xf32>
      %c0_12 = arith.constant 0 : index
      %c0_13 = arith.constant 0 : index
      %13 = vector.load %arg4[%c0_12, %c0_13] : memref<1x128xf32, #tpu.memory_space<vmem>>, vector<1x128xf32>
      %14 = vector.broadcast %13 : vector<1x128xf32> to vector<16x128xf32>
      %15 = arith.addf %12, %14 : vector<16x128xf32>
      %cst_14 = arith.constant 0.000000e+00 : f32
      %16 = vector.broadcast %cst_14 : f32 to vector<16x128xf32>
      %17 = arith.maximumf %15, %16 : vector<16x128xf32>
      %18 = arith.truncf %17 : vector<16x128xf32> to vector<16x128xbf16>
      %c0_15 = arith.constant 0 : index
      %c0_16 = arith.constant 0 : index
      %19 = vector.load %arg5[%c0_15, %c0_16] : memref<128x128xbf16, #tpu.memory_space<vmem>>, vector<128x128xbf16>
      %cst_17 = arith.constant dense<0.000000e+00> : vector<16x128xf32>
      %20 = tpu.matmul %18, %19, %cst_17 {dimension_numbers = #tpu.dot_dimension_numbers<[1], [0], [0], [1], [0, 0, 1, 1], [], []>} : vector<16x128xbf16>, vector<128x128xbf16>, vector<16x128xf32> -> vector<16x128xf32>
      %c0_18 = arith.constant 0 : index
      %c0_19 = arith.constant 0 : index
      %21 = vector.load %arg6[%c0_18, %c0_19] : memref<1x128xf32, #tpu.memory_space<vmem>>, vector<1x128xf32>
      %22 = vector.broadcast %21 : vector<1x128xf32> to vector<16x128xf32>
      %23 = arith.addf %20, %22 : vector<16x128xf32>
      %cst_20 = arith.constant 0.000000e+00 : f32
      %24 = vector.broadcast %cst_20 : f32 to vector<16x128xf32>
      %25 = arith.maximumf %23, %24 : vector<16x128xf32>
      %c0_21 = arith.constant 0 : index
      %c0_22 = arith.constant 0 : index
      %26 = vector.load %arg7[%c0_21, %c0_22] : memref<16x128xf32, #tpu.memory_space<vmem>>, vector<16x128xf32>
      tpu.vector_store %arg7[%c0_21, %c0_22], %25 {strides = array<i32>} : memref<16x128xf32, #tpu.memory_space<vmem>>, vector<16x128xf32>,
    } else {
    }
    return
  }
  func.func @transform_0(%arg0: i32, %arg1: i32) -> (i32, i32) {
    %c0_i32 = arith.constant 0 : i32
    return %arg0, %arg1 : i32, i32
  }
  func.func @transform_1(%arg0: i32, %arg1: i32) -> (i32, i32) {
    %c0_i32 = arith.constant 0 : i32
    %c0_i32_0 = arith.constant 0 : i32
    %c0_i32_1 = arith.constant 0 : i32
    return %c0_i32, %c0_i32_0 : i32, i32
  }
  func.func @transform_2(%arg0: i32, %arg1: i32) -> (i32, i32) {
    %c0_i32 = arith.constant 0 : i32
    %c0_i32_0 = arith.constant 0 : i32
    %c0_i32_1 = arith.constant 0 : i32
    return %c0_i32, %c0_i32_0 : i32, i32
  }
  func.func @transform_3(%arg0: i32, %arg1: i32) -> (i32, i32) {
    %c0_i32 = arith.constant 0 : i32
    %c0_i32_0 = arith.constant 0 : i32
    %c0_i32_1 = arith.constant 0 : i32
    return %c0_i32, %c0_i32_0 : i32, i32
  }
  func.func @transform_4(%arg0: i32, %arg1: i32) -> (i32, i32) {
    %c0_i32 = arith.constant 0 : i32
    %c0_i32_0 = arith.constant 0 : i32
    %c0_i32_1 = arith.constant 0 : i32
    return %c0_i32, %c0_i32_0 : i32, i32
  }
  func.func @transform_5(%arg0: i32, %arg1: i32) -> (i32, i32) {
    %c0_i32 = arith.constant 0 : i32
    %c0_i32_0 = arith.constant 0 : i32
    return %arg0, %c0_i32 : i32, i32
  }
}

</mosaic_0001>

<llo_original>
// kernel: fpn2mlp_feature_extractor.1
$region0: #{fpn2mlp_feature_extractor.1}
  #allocation0 [shape = 'u32[]', space=smem, size = 0x4, offset = 0x4, fixed_abs, tag = 'smem constant byte address 0x4 - core index']
  #allocation1 [shape = 'u32[144,128]{1,0:T(1,128)}', space=vmem, size = 0x12000, scoped, tag = 'internal scratch']
  #allocation2 [shape = 'f32[16,128]{1,0:T(8,128)}', space=vmem, size = 0x2000, scoped, tag = 'scratch operand']
  %s0 = inlined_call_operand.vmem [shape: bf16[16,128], index: 0, kind: input, shape index: {}]
  %s1 = inlined_call_operand.vmem [shape: bf16[128,128], index: 1, kind: input, shape index: {}]
  %s2 = inlined_call_operand.vmem [shape: f32[1,128], index: 2, kind: input, shape index: {}]
  %s3 = inlined_call_operand.vmem [shape: bf16[128,128], index: 3, kind: input, shape index: {}]
  %s4 = inlined_call_operand.vmem [shape: f32[1,128], index: 4, kind: input, shape index: {}]
  %s5 = inlined_call_operand.hbm [shape: f32[16,128], index: 5, kind: output, shape index: {}]
  %s6 = sld [smem:[#allocation0]]
  $region38: #{fpn2mlp_feature_extractor.1} parent=0
    _
  %s8 = ssub.s32 1, %s6
  %s9 = scalar_select 0, %s8, %s6
  $region1: #{fpn2mlp_feature_extractor.1} parent=0
    #allocation3 [shape = 'u8[8192]{0}', space=vmem, size = 0x2000, scoped, tag = 'output window, operand 0, single buffered']
    #allocation4 [shape = 's32[1]{0}', space=sflag, size = 0x4, scoped, tag = 'scoped memory for fpn2mlp_feature_extractor.1']
    %10 = vsyncpa [#allocation4], 0
    // Predicated region
    $region2: #{fpn2mlp_feature_extractor.1} parent=1 // pred_check
      _
    $region3: #{fpn2mlp_feature_extractor.1} parent=1 // pred_check_branch
      %12 = sbr.rel (0) target = $region5
    $region4: #{fpn2mlp_feature_extractor.1} parent=1 // pred_region
      _
    $region5: #{fpn2mlp_feature_extractor.1} parent=1 // pred_fallthru
      _
    // Predicated region
    $region6: #{fpn2mlp_feature_extractor.1} parent=1 // pred_check
      _
    $region7: #{fpn2mlp_feature_extractor.1} parent=1 // pred_check_branch
      %14 = sbr.rel (0) target = $region9
    $region8: #{fpn2mlp_feature_extractor.1} parent=1 // pred_region
      _
    $region9: #{fpn2mlp_feature_extractor.1} parent=1 // pred_fallthru
      _
    // Predicated region
    $region10: #{fpn2mlp_feature_extractor.1} parent=1 // pred_check
      _
    $region11: #{fpn2mlp_feature_extractor.1} parent=1 // pred_check_branch
      %16 = sbr.rel (0) target = $region13
    $region12: #{fpn2mlp_feature_extractor.1} parent=1 // pred_region
      _
    $region13: #{fpn2mlp_feature_extractor.1} parent=1 // pred_fallthru
      _
    // Predicated region
    $region14: #{fpn2mlp_feature_extractor.1} parent=1 // pred_check
      _
    $region15: #{fpn2mlp_feature_extractor.1} parent=1 // pred_check_branch
      %18 = sbr.rel (0) target = $region17
    $region16: #{fpn2mlp_feature_extractor.1} parent=1 // pred_region
      _
    $region17: #{fpn2mlp_feature_extractor.1} parent=1 // pred_fallthru
      _
    // Predicated region
    $region18: #{fpn2mlp_feature_extractor.1} parent=1 // pred_check
      _
    $region19: #{fpn2mlp_feature_extractor.1} parent=1 // pred_check_branch
      %20 = sbr.rel (0) target = $region21
    $region20: #{fpn2mlp_feature_extractor.1} parent=1 // pred_region
      _
    $region21: #{fpn2mlp_feature_extractor.1} parent=1 // pred_fallthru
      _
    %p22 = scmp.eq.s32.totalorder 0, 0
    // Predicated region
    $region22: #{fpn2mlp_feature_extractor.1} parent=1 // pred_check
      %p23 = pneg %p22
    $region23: #{fpn2mlp_feature_extractor.1} parent=1 // pred_check_branch
      %25 = sbr.rel (%p23) target = $region25
    $region24: #{fpn2mlp_feature_extractor.1} parent=1 // pred_region
      %26 = vst [vmem:[#allocation2] sm:$0xff] 0.0
      %27 = vst [vmem:[#allocation2 + $0x8] sm:$0xff] 0.0
    $region25: #{fpn2mlp_feature_extractor.1} parent=1 // pred_fallthru
      _
    %v28 = vld [vmem:[#allocation2] sm:$0xff]
    %v29 = vld [vmem:[#allocation2 + $0x8] sm:$0xff]
    %v30 = vld [vmem:[%s0] sm:$0xf]
    %v31 = vld [vmem:[%s0 + $0x4] sm:$0xf]
    %v32 = vld [vmem:[%s1] sm:$0xf]
    %v33 = vld [vmem:[%s1 + $0x4] sm:$0xf]
    %v34 = vld [vmem:[%s1 + $0x8] sm:$0xf]
    %v35 = vld [vmem:[%s1 + $0xc] sm:$0xf]
    %v36 = vld [vmem:[%s1 + $0x10] sm:$0xf]
    %v37 = vld [vmem:[%s1 + $0x14] sm:$0xf]
    %v38 = vld [vmem:[%s1 + $0x18] sm:$0xf]
    %v39 = vld [vmem:[%s1 + $0x1c] sm:$0xf]
    %v40 = vld [vmem:[%s1 + $0x20] sm:$0xf]
    %v41 = vld [vmem:[%s1 + $0x24] sm:$0xf]
    %v42 = vld [vmem:[%s1 + $0x28] sm:$0xf]
    %v43 = vld [vmem:[%s1 + $0x2c] sm:$0xf]
    %v44 = vld [vmem:[%s1 + $0x30] sm:$0xf]
    %v45 = vld [vmem:[%s1 + $0x34] sm:$0xf]
    %v46 = vld [vmem:[%s1 + $0x38] sm:$0xf]
    %v47 = vld [vmem:[%s1 + $0x3c] sm:$0xf]
    %v50 = vunpack.c.l.b16 %v30
    %v51 = vunpack.c.l.b16 %v31
    %v52 = vpack.c.b16 %v51, %v50
    %v70 = vunpack.c.l.b16 %v32
    %v71 = vunpack.c.l.b16 %v33
    %v72 = vunpack.c.l.b16 %v34
    %v73 = vunpack.c.l.b16 %v35
    %v74 = vunpack.c.l.b16 %v36
    %v75 = vunpack.c.l.b16 %v37
    %v76 = vunpack.c.l.b16 %v38
    %v77 = vunpack.c.l.b16 %v39
    %v78 = vunpack.c.l.b16 %v40
    %v79 = vunpack.c.l.b16 %v41
    %v80 = vunpack.c.l.b16 %v42
    %v81 = vunpack.c.l.b16 %v43
    %v82 = vunpack.c.l.b16 %v44
    %v83 = vunpack.c.l.b16 %v45
    %v84 = vunpack.c.l.b16 %v46
    %v85 = vunpack.c.l.b16 %v47
    %v86 = vpack.c.b16 %v71, %v70
    %v87 = vpack.c.b16 %v73, %v72
    %v88 = vpack.c.b16 %v75, %v74
    %v89 = vpack.c.b16 %v77, %v76
    %v90 = vpack.c.b16 %v79, %v78
    %v91 = vpack.c.b16 %v81, %v80
    %v92 = vpack.c.b16 %v83, %v82
    %v93 = vpack.c.b16 %v85, %v84
    %102 = vmatprep.subr.bf16.mxu0 0
    %103 = vmatpush1.bf16.msra.mxu0 %v86
    %104 = vmatprep.subr.bf16.mxu0 0
    %105 = vmatpush1.bf16.msra.mxu0 %v87
    %106 = vmatprep.subr.bf16.mxu0 0
    %107 = vmatpush1.bf16.msra.mxu0 %v88
    %108 = vmatprep.subr.bf16.mxu0 0
    %109 = vmatpush1.bf16.msra.mxu0 %v89
    %110 = vmatprep.subr.bf16.mxu0 0
    %111 = vmatpush1.bf16.msra.mxu0 %v90
    %112 = vmatprep.subr.bf16.mxu0 0
    %113 = vmatpush1.bf16.msra.mxu0 %v91
    %114 = vmatprep.subr.bf16.mxu0 0
    %115 = vmatpush1.bf16.msra.mxu0 %v92
    %116 = vmatprep.subr.bf16.mxu0 0
    %117 = vmatpush1.bf16.msra.mxu0 %v93
    %118 = vmatprep.subr.bf16.mxu0 0
    %119 = vmatpush1.bf16.msra.mxu0 0
    %120 = vmatprep.subr.bf16.mxu0 0
    %121 = vmatpush1.bf16.msra.mxu0 0
    %122 = vmatprep.subr.bf16.mxu0 0
    %123 = vmatpush1.bf16.msra.mxu0 0
    %124 = vmatprep.subr.bf16.mxu0 0
    %125 = vmatpush1.bf16.msra.mxu0 0
    %126 = vmatprep.subr.bf16.mxu0 0
    %127 = vmatpush1.bf16.msra.mxu0 0
    %128 = vmatprep.subr.bf16.mxu0 0
    %129 = vmatpush1.bf16.msra.mxu0 0
    %130 = vmatprep.subr.bf16.mxu0 0
    %131 = vmatpush1.bf16.msra.mxu0 0
    %132 = vmatprep.subr.bf16.mxu0 0
    %133 = vmatpush1.bf16.msra.mxu0 0
    %134 = vmatprep.mubr.bf16.mxu0 0
    %135 = vmatmul.mubr.bf16.gmra.mrb[0].mxu0 %v52
    %v136 = vpop.f32.mrb[0].mxu0
    %v137 = vadd.f32 0.0, %v136
    %v138 = vpop.f32.mrb[0].mxu0
    %v139 = vpop.f32.mrb[0].mxu0
    %v140 = vadd.f32 0.0, %v139
    %v141 = vpop.f32.mrb[0].mxu0
    %142 = vdwg.mxu0
    %v143 = vadd.f32 %v28, %v137
    %v144 = vadd.f32 %v29, %v140
    %145 = vst [vmem:[#allocation2] sm:$0xff] %v143
    %146 = vst [vmem:[#allocation2 + $0x8] sm:$0xff] %v144
    // Predicated region
    $region26: #{fpn2mlp_feature_extractor.1} parent=1 // pred_check
      %p147 = pneg %p22
    $region27: #{fpn2mlp_feature_extractor.1} parent=1 // pred_check_branch
      %149 = sbr.rel (%p147) target = $region29
    $region28: #{fpn2mlp_feature_extractor.1} parent=1 // pred_region
      %v150 = vld [vmem:[#allocation2] sm:$0xff]
      %v151 = vld [vmem:[#allocation2 + $0x8] sm:$0xff]
      %v152 = vld [vmem:[%s2] sm:$0x1]
      %v154 = vlaneseq
      %v155 = vshrl.u32 %v154, 7
      %v156 = vsub.s32 0, %v155
      %v157 = vrot.slane %v152, %v156
      %v159 = vadd.f32 %v150, %v157
      %v160 = vadd.f32 %v151, %v157
      %v161 = vmax.f32 %v159, 0.0
      %v162 = vmax.f32 %v160, 0.0
      %v163 = vpack.c.bf16 %v162, %v161
      %v164 = vld [vmem:[%s3] sm:$0xf]
      %v165 = vld [vmem:[%s3 + $0x4] sm:$0xf]
      %v166 = vld [vmem:[%s3 + $0x8] sm:$0xf]
      %v167 = vld [vmem:[%s3 + $0xc] sm:$0xf]
      %v168 = vld [vmem:[%s3 + $0x10] sm:$0xf]
      %v169 = vld [vmem:[%s3 + $0x14] sm:$0xf]
      %v170 = vld [vmem:[%s3 + $0x18] sm:$0xf]
      %v171 = vld [vmem:[%s3 + $0x1c] sm:$0xf]
      %v172 = vld [vmem:[%s3 + $0x20] sm:$0xf]
      %v173 = vld [vmem:[%s3 + $0x24] sm:$0xf]
      %v174 = vld [vmem:[%s3 + $0x28] sm:$0xf]
      %v175 = vld [vmem:[%s3 + $0x2c] sm:$0xf]
      %v176 = vld [vmem:[%s3 + $0x30] sm:$0xf]
      %v177 = vld [vmem:[%s3 + $0x34] sm:$0xf]
      %v178 = vld [vmem:[%s3 + $0x38] sm:$0xf]
      %v179 = vld [vmem:[%s3 + $0x3c] sm:$0xf]
      %v180 = vld [vmem:[%s4] sm:$0x1]
      %v182 = vlaneseq
      %v183 = vshrl.u32 %v182, 7
      %v184 = vsub.s32 0, %v183
      %v185 = vrot.slane %v180, %v184
      %v203 = vunpack.c.l.b16 %v164
      %v204 = vunpack.c.l.b16 %v165
      %v205 = vunpack.c.l.b16 %v166
      %v206 = vunpack.c.l.b16 %v167
      %v207 = vunpack.c.l.b16 %v168
      %v208 = vunpack.c.l.b16 %v169
      %v209 = vunpack.c.l.b16 %v170
      %v210 = vunpack.c.l.b16 %v171
      %v211 = vunpack.c.l.b16 %v172
      %v212 = vunpack.c.l.b16 %v173
      %v213 = vunpack.c.l.b16 %v174
      %v214 = vunpack.c.l.b16 %v175
      %v215 = vunpack.c.l.b16 %v176
      %v216 = vunpack.c.l.b16 %v177
      %v217 = vunpack.c.l.b16 %v178
      %v218 = vunpack.c.l.b16 %v179
      %v219 = vpack.c.b16 %v204, %v203
      %v220 = vpack.c.b16 %v206, %v205
      %v221 = vpack.c.b16 %v208, %v207
      %v222 = vpack.c.b16 %v210, %v209
      %v223 = vpack.c.b16 %v212, %v211
      %v224 = vpack.c.b16 %v214, %v213
      %v225 = vpack.c.b16 %v216, %v215
      %v226 = vpack.c.b16 %v218, %v217
      %235 = vmatprep.subr.bf16.mxu0 0
      %236 = vmatpush1.bf16.msra.mxu0 %v219
      %237 = vmatprep.subr.bf16.mxu0 0
      %238 = vmatpush1.bf16.msra.mxu0 %v220
      %239 = vmatprep.subr.bf16.mxu0 0
      %240 = vmatpush1.bf16.msra.mxu0 %v221
      %241 = vmatprep.subr.bf16.mxu0 0
      %242 = vmatpush1.bf16.msra.mxu0 %v222
      %243 = vmatprep.subr.bf16.mxu0 0
      %244 = vmatpush1.bf16.msra.mxu0 %v223
      %245 = vmatprep.subr.bf16.mxu0 0
      %246 = vmatpush1.bf16.msra.mxu0 %v224
      %247 = vmatprep.subr.bf16.mxu0 0
      %248 = vmatpush1.bf16.msra.mxu0 %v225
      %249 = vmatprep.subr.bf16.mxu0 0
      %250 = vmatpush1.bf16.msra.mxu0 %v226
      %251 = vmatprep.subr.bf16.mxu0 0
      %252 = vmatpush1.bf16.msra.mxu0 0
      %253 = vmatprep.subr.bf16.mxu0 0
      %254 = vmatpush1.bf16.msra.mxu0 0
      %255 = vmatprep.subr.bf16.mxu0 0
      %256 = vmatpush1.bf16.msra.mxu0 0
      %257 = vmatprep.subr.bf16.mxu0 0
      %258 = vmatpush1.bf16.msra.mxu0 0
      %259 = vmatprep.subr.bf16.mxu0 0
      %260 = vmatpush1.bf16.msra.mxu0 0
      %261 = vmatprep.subr.bf16.mxu0 0
      %262 = vmatpush1.bf16.msra.mxu0 0
      %263 = vmatprep.subr.bf16.mxu0 0
      %264 = vmatpush1.bf16.msra.mxu0 0
      %265 = vmatprep.subr.bf16.mxu0 0
      %266 = vmatpush1.bf16.msra.mxu0 0
      %267 = vmatprep.mubr.bf16.mxu0 0
      %268 = vmatmul.mubr.bf16.gmra.mrb[0].mxu0 %v163
      %v269 = vpop.f32.mrb[0].mxu0
      %v270 = vadd.f32 %v185, %v269
      %v271 = vpop.f32.mrb[0].mxu0
      %v272 = vpop.f32.mrb[0].mxu0
      %v273 = vadd.f32 %v185, %v272
      %v274 = vpop.f32.mrb[0].mxu0
      %275 = vdwg.mxu0
      %v276 = vmax.f32 %v270, 0.0
      %v277 = vmax.f32 %v273, 0.0
      %278 = vst [vmem:[#allocation3] sm:$0xff] %v276
      %279 = vst [vmem:[#allocation3 + $0x8] sm:$0xff] %v277
    $region29: #{fpn2mlp_feature_extractor.1} parent=1 // pred_fallthru
      _
    // Predicated region
    $region30: #{fpn2mlp_feature_extractor.1} parent=1 // pred_check
      _
    $region31: #{fpn2mlp_feature_extractor.1} parent=1 // pred_check_branch
      %281 = sbr.rel (0) target = $region33
    $region32: #{fpn2mlp_feature_extractor.1} parent=1 // pred_region
      %s283 = ssub.s32 256, 256
      %284 = vsyncadd [#allocation4], %s283
      %s285 = sshll.u32 [#allocation3], 4
      %s286 = int_to_ptr.vmem [resolvable:$true] %s285
      %291 = dma.vmem_to_hbm [thread:$0]  %s286, 256, %s5, [#allocation4], 128, 128, 8
    $region33: #{fpn2mlp_feature_extractor.1} parent=1 // pred_fallthru
      _
    // Predicated region
    $region34: #{fpn2mlp_feature_extractor.1} parent=1 // pred_check
      _
    $region35: #{fpn2mlp_feature_extractor.1} parent=1 // pred_check_branch
      %293 = sbr.rel (0) target = $region37
    $region36: #{fpn2mlp_feature_extractor.1} parent=1 // pred_region
      %294 = dma.done [#allocation4], 256
    $region37: #{fpn2mlp_feature_extractor.1} parent=1 // pred_fallthru
      _
    %295 = vsyncpa [#allocation4], 1

</llo_original>
